<compile_context>
chip_gen: v7x
topology: tpu7x:2x2x1
jax: 0.10.0
libtpu: 0.0.40
codegen_flags: <defaults>
</compile_context>

<pallas_src>
import jax
import jax.numpy as jnp
from jax.experimental import pallas as pl
from jax.experimental.pallas import tpu as pltpu


def _permute_tile_kernel(x_ref, o_ref):
    # x_ref: (tt, tc) VMEM tile, o_ref: (tc, tt) VMEM tile.
    # One lane/sublane-aligned XLU transpose per grid step.
    # TODO(synk): on v7x with sub-32-bit dtypes, if the bundle dump shows the
    # XLU (2 units) binding before HBM at 3.2 TB/s, transpose at 32-bit
    # granularity via pltpu.bitcast of adjacent element pairs + a roll.
    o_ref[...] = jnp.transpose(x_ref[...], (1, 0))


def _round_up(a, m):
    return ((a + m - 1) // m) * m


def permute_021_pallas(x, *, max_tile_t=None, max_tile_c=512):
    """Pallas equivalent of torch `x.permute(0, 2, 1)` for a (B, T, C) array."""
    B, T, C = x.shape
    itemsize = jnp.dtype(x.dtype).itemsize

    if max_tile_t is None:
        # Output last dim is tt: widen it for packed (sub-32-bit) dtypes so
        # contiguous store rows stay >= 2 KiB and lane-dense.
        max_tile_t = 512 if itemsize >= 4 else 1024

    # Tiles are 128-multiples, clamped only by the (128-rounded) dim itself.
    # Partial edge blocks are handled by Pallas masking — no exact-divisor
    # requirement, no wrapper-side padding.
    tt = min(max_tile_t, _round_up(T, 128))
    tc = min(max_tile_c, _round_up(C, 128))

    n_t = pl.cdiv(T, tt)
    n_c = pl.cdiv(C, tc)

    # in + out tiles, double-buffered, with headroom; capped below v7x's
    # 64 MiB physical VMEM so Mosaic keeps room for internal scratch.
    vmem_limit = int(min(max(8 * tt * tc * itemsize, 32 * 1024 * 1024),
                         48 * 1024 * 1024))

    return pl.pallas_call(
        _permute_tile_kernel,
        out_shape=jax.ShapeDtypeStruct((B, C, T), x.dtype),
        grid_spec=pltpu.PrefetchScalarGridSpec(
            num_scalar_prefetch=0,
            grid=(B, n_c, n_t),
            # Leading batch dim squeezed (None) -> kernel refs are 2-D.
            in_specs=[pl.BlockSpec((None, tt, tc), lambda b, k, j: (b, j, k))],
            out_specs=pl.BlockSpec((None, tc, tt), lambda b, k, j: (b, k, j)),
        ),
        compiler_params=pltpu.CompilerParams(
            dimension_semantics=("parallel", "parallel", "parallel"),
            vmem_limit_bytes=vmem_limit,
        ),
    )(x)


# Below this many total bytes, pallas_call launch / materialization overhead
# beats any kernel win; XLA's native transpose (often folded into the
# consumer's layout) is strictly faster.
_PALLAS_MIN_BYTES = 512 * 1024


def permute_021(x):
    B, T, C = x.shape
    if B * T * C * jnp.dtype(x.dtype).itemsize < _PALLAS_MIN_BYTES:
        return jnp.transpose(x, (0, 2, 1))
    return permute_021_pallas(x)


class ModelWrapperJAX:
    """JAX/Pallas port of the deterministic part of ModelWrapper.forward."""

    def __init__(self, model_id: str = "synthetic", **kwargs):
        self.model_id = model_id
        self.kwargs = kwargs
        self.model = None  # reference module has no trainable parameters

    def forward(self, x):
        # x: (B, T, C) -> (B, C, T) on-TPU (torch x.permute(0, 2, 1)).
        x_perm = permute_021(x)
        # torch.tensor([x.size(2)]) after the permute == original time length T.
        x_lengths = jnp.array([x_perm.shape[2]], dtype=jnp.int32)
        # TODO(synk): the reference then writes a temp .wav (soundfile) and
        # calls an external ASR model's `transcribe` (or raises ValueError when
        # self.model is None); that path is host-side I/O / external inference
        # with no Pallas equivalent, so the preprocessed tensors are returned.
        return x_perm, x_lengths


if __name__ == "__main__":
    key = jax.random.PRNGKey(0)
    k0, k1, k2, k3 = jax.random.split(key, 4)

    # Small ASR-feature-like input: (batch, time, channels).
    B, T, C = 2, 384, 128
    x = jax.random.normal(k0, (B, T, C), dtype=jnp.float32)

    wrapper = ModelWrapperJAX("synthetic-asr")
    x_perm, x_lengths = wrapper.forward(x)
    x_perm = jax.block_until_ready(x_perm)
    jax.block_until_ready(x_lengths)

    ref = jnp.transpose(x, (0, 2, 1))
    assert x_perm.shape == (B, C, T)
    assert x_lengths.shape == (1,) and int(x_lengths[0]) == T
    assert jnp.allclose(x_perm, ref)

    # Direct Pallas path on the 128-aligned shape (single tile per batch).
    y1 = jax.block_until_ready(permute_021_pallas(x))
    assert jnp.allclose(y1, ref)

    # Ragged (non-128-aligned) dims smaller than a tile: fully partial blocks,
    # no wrapper-side pad/slice anymore.
    x2 = jax.random.normal(k1, (2, 200, 80), dtype=jnp.float32)
    y2 = jax.block_until_ready(permute_021_pallas(x2))
    assert jnp.allclose(y2, jnp.transpose(x2, (0, 2, 1)))

    # Multi-tile grid with partial edge blocks (T=640 -> 2 t-tiles of 512,
    # C=200 -> one partial 256 c-tile); also >=2 tile units when B==1.
    x3 = jax.random.normal(k2, (1, 640, 200), dtype=jnp.float32)
    y3 = jax.block_until_ready(permute_021_pallas(x3))
    assert jnp.allclose(y3, jnp.transpose(x3, (0, 2, 1)))

    # Sub-32-bit dtype path (wider tt tile for lane-dense packed stores).
    x4 = jax.random.normal(k3, (2, 256, 384), dtype=jnp.float32).astype(jnp.bfloat16)
    y4 = jax.block_until_ready(permute_021_pallas(x4))
    assert jnp.array_equal(y4, jnp.transpose(x4, (0, 2, 1)))

    print("KERNEL_OK")
</pallas_src>

<mosaic_0001>
module attributes {stable_mosaic.version = 11 : i64} {
  func.func @_permute_tile_kernel(%arg0: i32, %arg1: i32, %arg2: i32, %arg3: memref<1x384x128xf32, #tpu.memory_space<vmem>>, %arg4: memref<1x128x384xf32, #tpu.memory_space<vmem>>) attributes {dimension_semantics = [#tpu.dimension_semantics<parallel>, #tpu.dimension_semantics<parallel>, #tpu.dimension_semantics<parallel>], iteration_bounds = array<i64: 2, 1, 1>, scalar_prefetch = 0 : i64, scratch_operands = 0 : i64, tpu.core_type = #tpu.core_type<tc>, window_params = [{transform_indices = @transform_0, window_bounds = array<i64: 1, 384, 128>}, {transform_indices = @transform_1, window_bounds = array<i64: 1, 128, 384>}]} {
    %c0 = arith.constant 0 : index
    %c0_0 = arith.constant 0 : index
    %c0_1 = arith.constant 0 : index
    %0 = vector.load %arg3[%c0, %c0_0, %c0_1] : memref<1x384x128xf32, #tpu.memory_space<vmem>>, vector<1x384x128xf32>
    %1 = vector.shape_cast %0 : vector<1x384x128xf32> to vector<384x128xf32>
    %2 = tpu.transpose %1, [1, 0] : vector<384x128xf32> -> vector<128x384xf32>
    %c0_2 = arith.constant 0 : index
    %c0_3 = arith.constant 0 : index
    %c0_4 = arith.constant 0 : index
    %3 = vector.load %arg4[%c0_2, %c0_3, %c0_4] : memref<1x128x384xf32, #tpu.memory_space<vmem>>, vector<1x128x384xf32>
    %4 = vector.shape_cast %3 : vector<1x128x384xf32> to vector<128x384xf32>
    %5 = vector.shape_cast %2 : vector<128x384xf32> to vector<1x128x384xf32>
    tpu.vector_store %arg4[%c0_2, %c0_3, %c0_4], %5 {strides = array<i32>} : memref<1x128x384xf32, #tpu.memory_space<vmem>>, vector<1x128x384xf32>,
    return
  }
  func.func @transform_0(%arg0: i32, %arg1: i32, %arg2: i32) -> (i32, i32, i32) {
    %c0_i32 = arith.constant 0 : i32
    return %arg0, %arg2, %arg1 : i32, i32, i32
  }
  func.func @transform_1(%arg0: i32, %arg1: i32, %arg2: i32) -> (i32, i32, i32) {
    %c0_i32 = arith.constant 0 : i32
    return %arg0, %arg1, %arg2 : i32, i32, i32
  }
}

</mosaic_0001>

<llo_original>
// kernel: tpu_custom_call.1
$region0: #{tpu_custom_call.1}
  #allocation0 [shape = 'u32[]', space=smem, size = 0x4, offset = 0x4, fixed_abs, tag = 'smem constant byte address 0x4 - core index']
  #allocation1 [shape = 'u32[144,128]{1,0:T(1,128)}', space=vmem, size = 0x12000, scoped, tag = 'internal scratch']
  %s0 = inlined_call_operand.hbm [shape: f32[2,384,128], index: 0, kind: input, shape index: {}]
  %s1 = inlined_call_operand.hbm [shape: f32[2,128,384], index: 1, kind: output, shape index: {}]
  %s2 = sld [smem:[#allocation0]]
  $region41: #{tpu_custom_call.1} parent=0
    _
  %s4 = ssub.s32 1, %s2
  %s5 = scalar_select 0, %s4, %s2
  $region1: #{tpu_custom_call.1} parent=0
    #allocation2 [shape = 'u8[393216]{0}', space=vmem, size = 0x60000, scoped, tag = 'input window, operand 0']
    #allocation3 [shape = 's32[2]{0}', space=sflag, size = 0x8, scoped, tag = 'scoped memory for tpu_custom_call.1']
    #allocation4 [shape = 's32[2]{0}', space=sflag, size = 0x8, scoped, tag = 'scoped memory for tpu_custom_call.1']
    #allocation5 [shape = 'u8[393216]{0}', space=vmem, size = 0x60000, scoped, tag = 'output window, operand 0']
    %6 = vsyncpa [#allocation3], 0
    %s7 = scalar_lea.sflag [#allocation3], 1
    %8 = vsyncpa %s7, 0
    %9 = vsyncpa [#allocation4], 0
    %s10 = scalar_lea.sflag [#allocation4], 1
    %11 = vsyncpa %s10, 0
    loop: start=0, step=1, limit=4
    $region2: #{tpu_custom_call.1} parent=1 // loop_pre_header
      _
    $region3: #{tpu_custom_call.1} parent=1 // loop_header
      %s13 = sphi 0, %s17
      %p14 = scmp.ge.s32.totalorder %s13, 4
      %s20 = sphi 0, %s39
      %s21 = sphi 0, %s35
      %s22 = sphi 0, %s31
      %s23 = sphi 0, %s20
      %s24 = sphi 0, %s21
      %s25 = sphi 0, %s22
      %s26 = sphi 0, %s23
      %s27 = sphi 0, %s24
      %s28 = sphi 0, %s25
      %s46 = sphi 0, %s48
      %s49 = sphi 0, %s46
      %s50 = sphi 0, %s49
      %s66 = sphi 0, %s50
      %s76 = sphi 0, %s78
      %s79 = sphi 0, %s76
      %s80 = sphi 0, %s79
      %s96 = sphi 0, %s80
    $region4: #{tpu_custom_call.1} parent=1 // loop_header_branch
      %16 = sbr.rel (%p14) target = $region8
    $region5: #{tpu_custom_call.1} parent=1 // loop_body
      %s18 = ssub.s32 %s13, 1
      %s19 = ssub.s32 %s13, 2
      %s29 = sadd.s32 1, %s22
      %p30 = scmp.ge.s32.totalorder %s29, 1
      %s31 = scalar_select %p30, 0, %s29
      %s32 = sadd.s32 1, %s21
      %s33 = scalar_select %p30, %s32, %s21
      %p34 = scmp.ge.s32.totalorder %s33, 1
      %s35 = scalar_select %p34, 0, %s33
      %s36 = sadd.s32 1, %s20
      %s37 = scalar_select %p34, %s36, %s20
      %p38 = scmp.ge.s32.totalorder %s37, 2
      %s39 = scalar_select %p38, 0, %s37
      %s40 = ssub.s32 %s20, %s39
      %s41 = ssub.s32 %s22, %s31
      %s42 = sor.u32 %s40, %s41
      %s43 = ssub.s32 %s21, %s35
      %s44 = sor.u32 %s42, %s43
      %p45 = scmp.eq.s32.totalorder %s44, 0
      %s47 = sadd.s32 %s46, 1
      %s48 = scalar_select %p45, %s46, %s47
      %p51 = pneg %p45
      %p52 = scmp.eq.s32.totalorder %s13, 1
      %p53 = por %p51, %p52
      %p54 = scmp.ne.s32.totalorder %s46, %s49
      %p55 = scmp.eq.s32.totalorder %s13, 0
      %p56 = por %p54, %p55
      %p57 = scmp.ne.s32.totalorder %s46, %s49
      %p58 = scmp.eq.s32.totalorder %s18, 1
      %p59 = por %p57, %p58
      %p60 = scmp.ne.s32.totalorder %s49, %s50
      %p61 = scmp.eq.s32.totalorder %s18, 0
      %p62 = por %p60, %p61
      %p63 = scmp.ne.s32.totalorder %s49, %s50
      %p64 = scmp.eq.s32.totalorder %s19, 1
      %p65 = por %p63, %p64
      %p67 = scmp.ne.s32.totalorder %s50, %s66
      %p68 = scmp.eq.s32.totalorder %s19, 0
      %p69 = por %p67, %p68
      %s70 = ssub.s32 %s20, %s39
      %s71 = ssub.s32 %s21, %s35
      %s72 = sor.u32 %s70, %s71
      %s73 = ssub.s32 %s22, %s31
      %s74 = sor.u32 %s72, %s73
      %p75 = scmp.eq.s32.totalorder %s74, 0
      %s77 = sadd.s32 %s76, 1
      %s78 = scalar_select %p75, %s76, %s77
      %p81 = pneg %p75
      %p82 = scmp.eq.s32.totalorder %s13, 1
      %p83 = por %p81, %p82
      %p84 = scmp.ne.s32.totalorder %s76, %s79
      %p85 = scmp.eq.s32.totalorder %s13, 0
      %p86 = por %p84, %p85
      %p87 = scmp.ne.s32.totalorder %s76, %s79
      %p88 = scmp.eq.s32.totalorder %s18, 1
      %p89 = por %p87, %p88
      %p90 = scmp.ne.s32.totalorder %s79, %s80
      %p91 = scmp.eq.s32.totalorder %s18, 0
      %p92 = por %p90, %p91
      %p93 = scmp.ne.s32.totalorder %s79, %s80
      %p94 = scmp.eq.s32.totalorder %s19, 1
      %p95 = por %p93, %p94
      %p97 = scmp.ne.s32.totalorder %s80, %s96
      %p98 = scmp.eq.s32.totalorder %s19, 0
      %p99 = por %p97, %p98
      %p100 = scmp.le.s32.totalorder 1, %s13
      %p101 = scmp.lt.s32.totalorder %s13, 3
      %p102 = pnand %p100, %p101
      %p103 = pneg %p102
      // Predicated region
      $region9: #{tpu_custom_call.1} parent=5 // pred_check
        _
      $region10: #{tpu_custom_call.1} parent=5 // pred_check_branch
        %105 = sbr.rel (%p102) target = $region12
      $region11: #{tpu_custom_call.1} parent=5 // pred_region
        %s106 = ssub.s32 %s13, 1
      $region12: #{tpu_custom_call.1} parent=5 // pred_fallthru
        _
      %p107 = scmp.lt.s32.totalorder %s13, 2
      // Predicated region
      $region13: #{tpu_custom_call.1} parent=5 // pred_check
        %p108 = pneg %p107
      $region14: #{tpu_custom_call.1} parent=5 // pred_check_branch
        %110 = sbr.rel (%p108) target = $region16
      $region15: #{tpu_custom_call.1} parent=5 // pred_region
        // Predicated region
        $region17: #{tpu_custom_call.1} parent=15 // pred_check
          %p111 = pneg %p56
        $region18: #{tpu_custom_call.1} parent=15 // pred_check_branch
          %113 = sbr.rel (%p111) target = $region20
        $region19: #{tpu_custom_call.1} parent=15 // pred_region
          %s114 = sand.u32 %s46, 1
          %s115 = scalar_lea.sflag [#allocation3], %s114
          %s116 = sand.u32 %s46, 1
          %s117 = smul.addr %s116, 384
          %s118 = scalar_lea.vmem [#allocation2], %s117
          %s119 = smul.u32 48, %s22
          %s121 = ssub.s32 6144, 6144
          %122 = vsyncadd %s115, %s121
          %s123 = sadd.s32 %s21, %s119
          %s124 = smul.addr %s20, 48
          %s125 = sadd.s32 %s123, %s124
          %s126 = smul.addr %s125, 128
          %s127 = scalar_lea.hbm %s0, %s126
          %s128 = sshll.u32 %s118, 4
          %s129 = int_to_ptr.vmem [resolvable:$true] %s128
          %134 = dma.hbm_to_vmem [thread:$0]  %s127, 6144, %s129, %s115, 128, 128, 8
        $region20: #{tpu_custom_call.1} parent=15 // pred_fallthru
          _
      $region16: #{tpu_custom_call.1} parent=5 // pred_fallthru
        _
      %p135 = scmp.le.s32.totalorder 1, %s13
      %p136 = scmp.lt.s32.totalorder %s13, 3
      %p137 = pnand %p135, %p136
      %p138 = pneg %p137
      // Predicated region
      $region21: #{tpu_custom_call.1} parent=5 // pred_check
        _
      $region22: #{tpu_custom_call.1} parent=5 // pred_check_branch
        %140 = sbr.rel (%p137) target = $region24
      $region23: #{tpu_custom_call.1} parent=5 // pred_region
        %s141 = ssub.s32 %s13, 1
        %s142 = sand.u32 %s49, 1
        %s143 = scalar_lea.sflag [#allocation3], %s142
        %s144 = sand.u32 %s49, 1
        %s145 = smul.addr %s144, 384
        %s146 = scalar_lea.vmem [#allocation2], %s145
        // Predicated region
        $region25: #{tpu_custom_call.1} parent=23 // pred_check
          %p147 = pneg %p62
        $region26: #{tpu_custom_call.1} parent=23 // pred_check_branch
          %149 = sbr.rel (%p147) target = $region28
        $region27: #{tpu_custom_call.1} parent=23 // pred_region
          %150 = dma.done %s143, 6144
        $region28: #{tpu_custom_call.1} parent=23 // pred_fallthru
          _
        %s151 = sand.u32 %s49, 1
        %s152 = scalar_lea.sflag [#allocation3], %s151
        %s153 = sand.u32 %s49, 1
        %s154 = smul.addr %s153, 384
        %s155 = scalar_lea.vmem [#allocation2], %s154
        %p156 = pneg %p62
        %p157 = pneg %p59
        %p158 = pneg %p92
        %p159 = pneg %p89
        %s160 = sand.u32 %s79, 1
        %s161 = scalar_lea.sflag [#allocation4], %s160
        %s162 = sand.u32 %s79, 1
        %s163 = smul.addr %s162, 384
        %s164 = scalar_lea.vmem [#allocation5], %s163
        %s165 = smul.u32 48, %s25
        %s166 = smul.u32 16, %s24
        %s167 = smul.u32 3, %s25
        %v168 = vld [vmem:[%s146] sm:$0xff]
        %v169 = vld [vmem:[%s146 + $0x8] sm:$0xff]
        %v170 = vld [vmem:[%s146 + $0x10] sm:$0xff]
        %v171 = vld [vmem:[%s146 + $0x18] sm:$0xff]
        %v172 = vld [vmem:[%s146 + $0x20] sm:$0xff]
        %v173 = vld [vmem:[%s146 + $0x28] sm:$0xff]
        %v174 = vld [vmem:[%s146 + $0x30] sm:$0xff]
        %v175 = vld [vmem:[%s146 + $0x38] sm:$0xff]
        %v176 = vld [vmem:[%s146 + $0x40] sm:$0xff]
        %v177 = vld [vmem:[%s146 + $0x48] sm:$0xff]
        %v178 = vld [vmem:[%s146 + $0x50] sm:$0xff]
        %v179 = vld [vmem:[%s146 + $0x58] sm:$0xff]
        %v180 = vld [vmem:[%s146 + $0x60] sm:$0xff]
        %v181 = vld [vmem:[%s146 + $0x68] sm:$0xff]
        %v182 = vld [vmem:[%s146 + $0x70] sm:$0xff]
        %v183 = vld [vmem:[%s146 + $0x78] sm:$0xff]
        %v184 = vld [vmem:[%s146 + $0x80] sm:$0xff]
        %v185 = vld [vmem:[%s146 + $0x88] sm:$0xff]
        %v186 = vld [vmem:[%s146 + $0x90] sm:$0xff]
        %v187 = vld [vmem:[%s146 + $0x98] sm:$0xff]
        %v188 = vld [vmem:[%s146 + $0xa0] sm:$0xff]
        %v189 = vld [vmem:[%s146 + $0xa8] sm:$0xff]
        %v190 = vld [vmem:[%s146 + $0xb0] sm:$0xff]
        %v191 = vld [vmem:[%s146 + $0xb8] sm:$0xff]
        %v192 = vld [vmem:[%s146 + $0xc0] sm:$0xff]
        %v193 = vld [vmem:[%s146 + $0xc8] sm:$0xff]
        %v194 = vld [vmem:[%s146 + $0xd0] sm:$0xff]
        %v195 = vld [vmem:[%s146 + $0xd8] sm:$0xff]
        %v196 = vld [vmem:[%s146 + $0xe0] sm:$0xff]
        %v197 = vld [vmem:[%s146 + $0xe8] sm:$0xff]
        %v198 = vld [vmem:[%s146 + $0xf0] sm:$0xff]
        %v199 = vld [vmem:[%s146 + $0xf8] sm:$0xff]
        %v200 = vld [vmem:[%s146 + $0x100] sm:$0xff]
        %v201 = vld [vmem:[%s146 + $0x108] sm:$0xff]
        %v202 = vld [vmem:[%s146 + $0x110] sm:$0xff]
        %v203 = vld [vmem:[%s146 + $0x118] sm:$0xff]
        %v204 = vld [vmem:[%s146 + $0x120] sm:$0xff]
        %v205 = vld [vmem:[%s146 + $0x128] sm:$0xff]
        %v206 = vld [vmem:[%s146 + $0x130] sm:$0xff]
        %v207 = vld [vmem:[%s146 + $0x138] sm:$0xff]
        %v208 = vld [vmem:[%s146 + $0x140] sm:$0xff]
        %v209 = vld [vmem:[%s146 + $0x148] sm:$0xff]
        %v210 = vld [vmem:[%s146 + $0x150] sm:$0xff]
        %v211 = vld [vmem:[%s146 + $0x158] sm:$0xff]
        %v212 = vld [vmem:[%s146 + $0x160] sm:$0xff]
        %v213 = vld [vmem:[%s146 + $0x168] sm:$0xff]
        %v214 = vld [vmem:[%s146 + $0x170] sm:$0xff]
        %v215 = vld [vmem:[%s146 + $0x178] sm:$0xff]
        %216 = vxpose.xlu0.b32.start [1/16] %v168, 128
        %217 = vxpose.xlu0.b32.cont [2/16] %v169, 128
        %218 = vxpose.xlu0.b32.cont [3/16] %v170, 128
        %219 = vxpose.xlu0.b32.cont [4/16] %v171, 128
        %220 = vxpose.xlu0.b32.cont [5/16] %v172, 128
        %221 = vxpose.xlu0.b32.cont [6/16] %v173, 128
        %222 = vxpose.xlu0.b32.cont [7/16] %v174, 128
        %223 = vxpose.xlu0.b32.cont [8/16] %v175, 128
        %224 = vxpose.xlu0.b32.cont [9/16] %v176, 128
        %225 = vxpose.xlu0.b32.cont [10/16] %v177, 128
        %226 = vxpose.xlu0.b32.cont [11/16] %v178, 128
        %227 = vxpose.xlu0.b32.cont [12/16] %v179, 128
        %228 = vxpose.xlu0.b32.cont [13/16] %v180, 128
        %229 = vxpose.xlu0.b32.cont [14/16] %v181, 128
        %230 = vxpose.xlu0.b32.cont [15/16] %v182, 128
        %231 = vxpose.xlu0.b32.end [16/16] %v183, 128
        %v232 = vpop.trf.xlu0
        %v233 = vpop.trf.xlu0
        %v234 = vpop.trf.xlu0
        %v235 = vpop.trf.xlu0
        %v236 = vpop.trf.xlu0
        %v237 = vpop.trf.xlu0
        %v238 = vpop.trf.xlu0
        %v239 = vpop.trf.xlu0
        %v240 = vpop.trf.xlu0
        %v241 = vpop.trf.xlu0
        %v242 = vpop.trf.xlu0
        %v243 = vpop.trf.xlu0
        %v244 = vpop.trf.xlu0
        %v245 = vpop.trf.xlu0
        %v246 = vpop.trf.xlu0
        %v247 = vpop.trf.xlu0
        %248 = vxpose.xlu0.b32.start [1/16] %v184, 128
        %249 = vxpose.xlu0.b32.cont [2/16] %v185, 128
        %250 = vxpose.xlu0.b32.cont [3/16] %v186, 128
        %251 = vxpose.xlu0.b32.cont [4/16] %v187, 128
        %252 = vxpose.xlu0.b32.cont [5/16] %v188, 128
        %253 = vxpose.xlu0.b32.cont [6/16] %v189, 128
        %254 = vxpose.xlu0.b32.cont [7/16] %v190, 128
        %255 = vxpose.xlu0.b32.cont [8/16] %v191, 128
        %256 = vxpose.xlu0.b32.cont [9/16] %v192, 128
        %257 = vxpose.xlu0.b32.cont [10/16] %v193, 128
        %258 = vxpose.xlu0.b32.cont [11/16] %v194, 128
        %259 = vxpose.xlu0.b32.cont [12/16] %v195, 128
        %260 = vxpose.xlu0.b32.cont [13/16] %v196, 128
        %261 = vxpose.xlu0.b32.cont [14/16] %v197, 128
        %262 = vxpose.xlu0.b32.cont [15/16] %v198, 128
        %263 = vxpose.xlu0.b32.end [16/16] %v199, 128
        %v264 = vpop.trf.xlu0
        %v265 = vpop.trf.xlu0
        %v266 = vpop.trf.xlu0
        %v267 = vpop.trf.xlu0
        %v268 = vpop.trf.xlu0
        %v269 = vpop.trf.xlu0
        %v270 = vpop.trf.xlu0
        %v271 = vpop.trf.xlu0
        %v272 = vpop.trf.xlu0
        %v273 = vpop.trf.xlu0
        %v274 = vpop.trf.xlu0
        %v275 = vpop.trf.xlu0
        %v276 = vpop.trf.xlu0
        %v277 = vpop.trf.xlu0
        %v278 = vpop.trf.xlu0
        %v279 = vpop.trf.xlu0
        %280 = vxpose.xlu0.b32.start [1/16] %v200, 128
        %281 = vxpose.xlu0.b32.cont [2/16] %v201, 128
        %282 = vxpose.xlu0.b32.cont [3/16] %v202, 128
        %283 = vxpose.xlu0.b32.cont [4/16] %v203, 128
        %284 = vxpose.xlu0.b32.cont [5/16] %v204, 128
        %285 = vxpose.xlu0.b32.cont [6/16] %v205, 128
        %286 = vxpose.xlu0.b32.cont [7/16] %v206, 128
        %287 = vxpose.xlu0.b32.cont [8/16] %v207, 128
        %288 = vxpose.xlu0.b32.cont [9/16] %v208, 128
        %289 = vxpose.xlu0.b32.cont [10/16] %v209, 128
        %290 = vxpose.xlu0.b32.cont [11/16] %v210, 128
        %291 = vxpose.xlu0.b32.cont [12/16] %v211, 128
        %292 = vxpose.xlu0.b32.cont [13/16] %v212, 128
        %293 = vxpose.xlu0.b32.cont [14/16] %v213, 128
        %294 = vxpose.xlu0.b32.cont [15/16] %v214, 128
        %295 = vxpose.xlu0.b32.end [16/16] %v215, 128
        %v296 = vpop.trf.xlu0
        %v297 = vpop.trf.xlu0
        %v298 = vpop.trf.xlu0
        %v299 = vpop.trf.xlu0
        %v300 = vpop.trf.xlu0
        %v301 = vpop.trf.xlu0
        %v302 = vpop.trf.xlu0
        %v303 = vpop.trf.xlu0
        %v304 = vpop.trf.xlu0
        %v305 = vpop.trf.xlu0
        %v306 = vpop.trf.xlu0
        %v307 = vpop.trf.xlu0
        %v308 = vpop.trf.xlu0
        %v309 = vpop.trf.xlu0
        %v310 = vpop.trf.xlu0
        %v311 = vpop.trf.xlu0
        %312 = vst [vmem:[%s164] sm:$0xff] %v232
        %313 = vst [vmem:[%s164 + $0x8] sm:$0xff] %v264
        %314 = vst [vmem:[%s164 + $0x10] sm:$0xff] %v296
        %315 = vst [vmem:[%s164 + $0x18] sm:$0xff] %v233
        %316 = vst [vmem:[%s164 + $0x20] sm:$0xff] %v265
        %317 = vst [vmem:[%s164 + $0x28] sm:$0xff] %v297
        %318 = vst [vmem:[%s164 + $0x30] sm:$0xff] %v234
        %319 = vst [vmem:[%s164 + $0x38] sm:$0xff] %v266
        %320 = vst [vmem:[%s164 + $0x40] sm:$0xff] %v298
        %321 = vst [vmem:[%s164 + $0x48] sm:$0xff] %v235
        %322 = vst [vmem:[%s164 + $0x50] sm:$0xff] %v267
        %323 = vst [vmem:[%s164 + $0x58] sm:$0xff] %v299
        %324 = vst [vmem:[%s164 + $0x60] sm:$0xff] %v236
        %325 = vst [vmem:[%s164 + $0x68] sm:$0xff] %v268
        %326 = vst [vmem:[%s164 + $0x70] sm:$0xff] %v300
        %327 = vst [vmem:[%s164 + $0x78] sm:$0xff] %v237
        %328 = vst [vmem:[%s164 + $0x80] sm:$0xff] %v269
        %329 = vst [vmem:[%s164 + $0x88] sm:$0xff] %v301
        %330 = vst [vmem:[%s164 + $0x90] sm:$0xff] %v238
        %331 = vst [vmem:[%s164 + $0x98] sm:$0xff] %v270
        %332 = vst [vmem:[%s164 + $0xa0] sm:$0xff] %v302
        %333 = vst [vmem:[%s164 + $0xa8] sm:$0xff] %v239
        %334 = vst [vmem:[%s164 + $0xb0] sm:$0xff] %v271
        %335 = vst [vmem:[%s164 + $0xb8] sm:$0xff] %v303
        %336 = vst [vmem:[%s164 + $0xc0] sm:$0xff] %v240
        %337 = vst [vmem:[%s164 + $0xc8] sm:$0xff] %v272
        %338 = vst [vmem:[%s164 + $0xd0] sm:$0xff] %v304
        %339 = vst [vmem:[%s164 + $0xd8] sm:$0xff] %v241
        %340 = vst [vmem:[%s164 + $0xe0] sm:$0xff] %v273
        %341 = vst [vmem:[%s164 + $0xe8] sm:$0xff] %v305
        %342 = vst [vmem:[%s164 + $0xf0] sm:$0xff] %v242
        %343 = vst [vmem:[%s164 + $0xf8] sm:$0xff] %v274
        %344 = vst [vmem:[%s164 + $0x100] sm:$0xff] %v306
        %345 = vst [vmem:[%s164 + $0x108] sm:$0xff] %v243
        %346 = vst [vmem:[%s164 + $0x110] sm:$0xff] %v275
        %347 = vst [vmem:[%s164 + $0x118] sm:$0xff] %v307
        %348 = vst [vmem:[%s164 + $0x120] sm:$0xff] %v244
        %349 = vst [vmem:[%s164 + $0x128] sm:$0xff] %v276
        %350 = vst [vmem:[%s164 + $0x130] sm:$0xff] %v308
        %351 = vst [vmem:[%s164 + $0x138] sm:$0xff] %v245
        %352 = vst [vmem:[%s164 + $0x140] sm:$0xff] %v277
        %353 = vst [vmem:[%s164 + $0x148] sm:$0xff] %v309
        %354 = vst [vmem:[%s164 + $0x150] sm:$0xff] %v246
        %355 = vst [vmem:[%s164 + $0x158] sm:$0xff] %v278
        %356 = vst [vmem:[%s164 + $0x160] sm:$0xff] %v310
        %357 = vst [vmem:[%s164 + $0x168] sm:$0xff] %v247
        %358 = vst [vmem:[%s164 + $0x170] sm:$0xff] %v279
        %359 = vst [vmem:[%s164 + $0x178] sm:$0xff] %v311
        %s360 = sand.u32 %s79, 1
        %s361 = scalar_lea.sflag [#allocation4], %s360
        %s362 = sand.u32 %s79, 1
        %s363 = smul.addr %s362, 384
        %s364 = scalar_lea.vmem [#allocation5], %s363
        // Predicated region
        $region29: #{tpu_custom_call.1} parent=23 // pred_check
          %p365 = pneg %p89
        $region30: #{tpu_custom_call.1} parent=23 // pred_check_branch
          %367 = sbr.rel (%p365) target = $region32
        $region31: #{tpu_custom_call.1} parent=23 // pred_region
          %s368 = smul.u32 16, %s24
          %s369 = smul.u32 3, %s25
          %s371 = ssub.s32 6144, 6144
          %372 = vsyncadd %s361, %s371
          %s373 = smul.addr %s368, 3
          %s374 = sadd.s32 %s369, %s373
          %s375 = smul.addr %s23, 48
          %s376 = sadd.s32 %s374, %s375
          %s377 = smul.addr %s376, 128
          %s378 = scalar_lea.hbm %s1, %s377
          %s379 = sshll.u32 %s364, 4
          %s380 = int_to_ptr.vmem [resolvable:$true] %s379
          %385 = dma.vmem_to_hbm [thread:$0]  %s380, 6144, %s378, %s361, 384, 384, 24
        $region32: #{tpu_custom_call.1} parent=23 // pred_fallthru
          _
      $region24: #{tpu_custom_call.1} parent=5 // pred_fallthru
        _
      %p386 = scmp.le.s32.totalorder 2, %s13
      // Predicated region
      $region33: #{tpu_custom_call.1} parent=5 // pred_check
        %p387 = pneg %p386
      $region34: #{tpu_custom_call.1} parent=5 // pred_check_branch
        %389 = sbr.rel (%p387) target = $region36
      $region35: #{tpu_custom_call.1} parent=5 // pred_region
        %s390 = ssub.s32 %s13, 2
        // Predicated region
        $region37: #{tpu_custom_call.1} parent=35 // pred_check
          %p391 = pneg %p95
        $region38: #{tpu_custom_call.1} parent=35 // pred_check_branch
          %393 = sbr.rel (%p391) target = $region40
        $region39: #{tpu_custom_call.1} parent=35 // pred_region
          %s394 = sand.u32 %s80, 1
          %s395 = scalar_lea.sflag [#allocation4], %s394
          %s396 = sand.u32 %s80, 1
          %s397 = smul.addr %s396, 384
          %s398 = scalar_lea.vmem [#allocation5], %s397
          %399 = dma.done %s395, 6144
        $region40: #{tpu_custom_call.1} parent=35 // pred_fallthru
          _
      $region36: #{tpu_custom_call.1} parent=5 // pred_fallthru
        _
    $region6: #{tpu_custom_call.1} parent=1 // loop_footer
      %s17 = sadd.s32 1, %s13
    $region7: #{tpu_custom_call.1} parent=1 // loop_footer_branch
      %12 = sbr.rel target = $region3
    $region8: #{tpu_custom_call.1} parent=1 // loop_exit
      _
    %400 = vsyncpa [#allocation3], 1
    %s401 = scalar_lea.sflag [#allocation3], 1
    %402 = vsyncpa %s401, 1
    %403 = vsyncpa [#allocation4], 1
    %s404 = scalar_lea.sflag [#allocation4], 1
    %405 = vsyncpa %s404, 1

</llo_original>
